<compile_context>
chip_gen: v7x
topology: tpu7x:2x2x1
jax: 0.10.0
libtpu: 0.0.40
codegen_flags: <defaults>
</compile_context>

<pallas_src>
import functools

import jax
import jax.numpy as jnp
from jax import lax
from jax.experimental import pallas as pl
from jax.experimental.pallas import tpu as pltpu


FILTERING_SIZE = 50
ENVELOPE_SIZE = FILTERING_SIZE * 2

_LANE = 128
_N_ACC = 8            # independent accumulators per conv (power of two)

_ROLL_LIKE_JNP = None  # cached result of the one-time roll-direction probe


def _round_up(v, m):
    return (v + m - 1) // m * m


def _roll_direction_like_jnp():
    """One-time micro-probe of pltpu.roll's rotate direction.

    The main kernel uses static shift amounts; probing the direction once makes
    those amounts provably correct regardless of the rotate convention of the
    underlying tpu.dynamic_rotate lowering.
    """
    global _ROLL_LIKE_JNP
    if _ROLL_LIKE_JNP is None:
        def probe(x_ref, o_ref):
            o_ref[...] = pltpu.roll(x_ref[...], 1, axis=1)

        x = lax.broadcasted_iota(jnp.float32, (8, _LANE), 1)
        y = pl.pallas_call(
            probe, out_shape=jax.ShapeDtypeStruct((8, _LANE), jnp.float32))(x)
        # jnp.roll semantics: the element at lane 0 moves to lane 1.
        _ROLL_LIKE_JNP = bool(y[0, 1] == 0.0)
    return _ROLL_LIKE_JNP


def _envelope_kernel(x_ref, w1_ref, w2_ref, b_ref, out_ref, *,
                     cpc, roll_like_jnp):
    # x_ref  : (1, C_in, T)          one batch element, T padded to a lane multiple
    # w1_ref : (OUT_C, F1)
    # w2_ref : (OUT_C, F2)
    # b_ref  : (OUT_C, 1)
    # out_ref: (1, OUT_C, T2_STORE)  T2_STORE = round_up(T2, 128) <= T
    c_in = x_ref.shape[1]
    t = x_ref.shape[2]
    out_c, f1 = w1_ref.shape
    f2 = w2_ref.shape[1]
    t2_store = out_ref.shape[2]

    x = x_ref[0]                    # (C_in, T)
    w1 = w1_ref[...]                # (OUT_C, F1)
    w2 = w2_ref[...]                # (OUT_C, F2)
    b = b_ref[...]                  # (OUT_C, 1)

    # --- grouped -> depthwise: replicate each input channel cpc times along
    #     sublanes, in-register (no HBM-side jnp.repeat, no DMA inflation). ---
    row_ids = lax.broadcasted_iota(jnp.int32, (out_c, 1), 0)      # (OUT_C, 1)
    x_rep = jnp.zeros((out_c, t), jnp.float32)
    for c in range(c_in):
        sel = ((row_ids >= c * cpc) &
               (row_ids < (c + 1) * cpc)).astype(jnp.float32)     # (OUT_C, 1)
        x_rep = x_rep + sel * jnp.broadcast_to(x[c:c + 1, :], (out_c, t))

    def shifted(src, k):
        # result[:, j] == src[:, j + k] for all j with j + k < t (rest wraps).
        if k == 0:
            return src
        amt = (t - k) % t if roll_like_jnp else k
        return pltpu.roll(src, amt, axis=1)

    def depthwise_full_width(src, w, taps):
        # Valid results occupy columns [0, t - taps]; the wrapped tail is cropped
        # by the caller.  _N_ACC independent accumulators keep the VALUs busy.
        accs = [jnp.zeros((out_c, t), jnp.float32) for _ in range(_N_ACC)]
        for k in range(taps):
            accs[k % _N_ACC] = accs[k % _N_ACC] + shifted(src, k) * w[:, k:k + 1]
        while len(accs) > 1:                       # pairwise tree reduction
            accs = [accs[i] + accs[i + 1] for i in range(0, len(accs), 2)]
        return accs[0]

    # conv_filtering (depthwise, VALID), then leaky_relu(slope=-1) == abs
    y = depthwise_full_width(x_rep, w1, f1)
    a = jnp.abs(y)
    # conv_envelope (depthwise, VALID) + bias
    z = depthwise_full_width(a, w2, f2)

    # Lane-aligned crop (t2_store is a multiple of 128) -> unmasked stores.
    out_ref[0] = (z[:, :t2_store] + b).astype(out_ref.dtype)


@functools.partial(jax.jit,
                   static_argnames=("channels_per_channel", "roll_like_jnp"))
def _forward_impl(x, w1, w2, b2, *, channels_per_channel, roll_like_jnp):
    n, c_in, t = x.shape
    out_c, f1 = w1.shape
    f2 = w2.shape[1]
    assert out_c == c_in * channels_per_channel
    t1 = t - f1 + 1
    t2 = t1 - f2 + 1
    assert t2 > 0

    # Pad time so the lane axis is 128-aligned (valid outputs are unaffected).
    t_pad = _round_up(t, _LANE)
    if t_pad != t:
        x = jnp.pad(x, ((0, 0), (0, 0), (0, t_pad - t)))
    # Lane-dense output slab; the (garbage) tail past t2 is cropped below.
    t2_store = min(_round_up(t2, _LANE), t_pad)

    b_col = b2.reshape(out_c, 1)
    kernel = functools.partial(_envelope_kernel, cpc=channels_per_channel,
                               roll_like_jnp=roll_like_jnp)

    cost = pl.CostEstimate(
        flops=2 * n * out_c * t_pad * (f1 + f2),
        transcendentals=0,
        bytes_accessed=4 * (n * c_in * t_pad + out_c * (f1 + f2 + 1)
                            + n * out_c * t2_store))

    out_full = pl.pallas_call(
        kernel,
        out_shape=jax.ShapeDtypeStruct((n, out_c, t2_store), x.dtype),
        grid_spec=pltpu.PrefetchScalarGridSpec(
            num_scalar_prefetch=0,
            grid=(n,),
            in_specs=[
                pl.BlockSpec((1, c_in, t_pad), lambda i: (i, 0, 0)),
                pl.BlockSpec((out_c, f1), lambda i: (0, 0)),
                pl.BlockSpec((out_c, f2), lambda i: (0, 0)),
                pl.BlockSpec((out_c, 1), lambda i: (0, 0)),
            ],
            out_specs=pl.BlockSpec((1, out_c, t2_store), lambda i: (i, 0, 0)),
        ),
        compiler_params=pltpu.CompilerParams(
            dimension_semantics=("parallel",)),
        cost_estimate=cost,
    )(x, w1, w2, b_col)

    return out_full[:, :, :t2]


def envelope_detector_forward(x, w1, w2, b2, *, channels_per_channel):
    """x: (N, C_in, T) float32 -> (N, OUT_C, T - 148) float32."""
    return _forward_impl(x, w1, w2, b2,
                         channels_per_channel=channels_per_channel,
                         roll_like_jnp=_roll_direction_like_jnp())


def _reference(x, w1, w2, b2):
    """Pure-JAX reference matching the PyTorch module."""
    n, c_in, t = x.shape
    out_c = w1.shape[0]
    y = lax.conv_general_dilated(
        x, w1.reshape(out_c, 1, FILTERING_SIZE),
        window_strides=(1,), padding="VALID",
        dimension_numbers=("NCH", "OIH", "NCH"),
        feature_group_count=c_in)
    y = jnp.abs(y)  # leaky_relu with negative_slope = -1
    z = lax.conv_general_dilated(
        y, w2.reshape(out_c, 1, ENVELOPE_SIZE),
        window_strides=(1,), padding="VALID",
        dimension_numbers=("NCH", "OIH", "NCH"),
        feature_group_count=out_c)
    return z + b2.reshape(1, out_c, 1)


if __name__ == "__main__":
    # Small shapes consistent with the module: T must exceed 50 + 100 - 2 = 148.
    N = 2
    IN_CHANNELS = 4
    CHANNELS_PER_CHANNEL = 2
    OUT_CHANNELS = IN_CHANNELS * CHANNELS_PER_CHANNEL
    T = 256

    key = jax.random.PRNGKey(0)
    kx, kw1, kw2, kb = jax.random.split(key, 4)
    x = jax.random.normal(kx, (N, IN_CHANNELS, T), dtype=jnp.float32)
    w1 = jax.random.normal(kw1, (OUT_CHANNELS, FILTERING_SIZE), jnp.float32) * 0.1
    w2 = jax.random.normal(kw2, (OUT_CHANNELS, ENVELOPE_SIZE), jnp.float32) * 0.1
    b2 = jax.random.normal(kb, (OUT_CHANNELS,), jnp.float32) * 0.1

    out = envelope_detector_forward(
        x, w1, w2, b2, channels_per_channel=CHANNELS_PER_CHANNEL)
    out = jax.block_until_ready(out)

    ref = _reference(x, w1, w2, b2)
    assert out.shape == (N, OUT_CHANNELS, T - FILTERING_SIZE - ENVELOPE_SIZE + 2)
    assert jnp.allclose(out, ref, atol=1e-3, rtol=1e-3)

    print("KERNEL_OK")
</pallas_src>

<mosaic_0001>
module attributes {stable_mosaic.version = 11 : i64} {
  func.func @probe(%arg0: memref<8x128xf32, #tpu.memory_space<vmem>>, %arg1: memref<8x128xf32, #tpu.memory_space<vmem>>) attributes {dimension_semantics = [], scalar_prefetch = 0 : i64, scratch_operands = 0 : i64, tpu.core_type = #tpu.core_type<tc>} {
    %c0 = arith.constant 0 : index
    %c0_0 = arith.constant 0 : index
    %0 = vector.load %arg0[%c0, %c0_0] : memref<8x128xf32, #tpu.memory_space<vmem>>, vector<8x128xf32>
    %c1_i32 = arith.constant 1 : i32
    %1 = tpu.dynamic_rotate %0 by %c1_i32 dim 1 : vector<8x128xf32>, i32 -> vector<8x128xf32>
    %c0_1 = arith.constant 0 : index
    %c0_2 = arith.constant 0 : index
    %2 = vector.load %arg1[%c0_1, %c0_2] : memref<8x128xf32, #tpu.memory_space<vmem>>, vector<8x128xf32>
    tpu.vector_store %arg1[%c0_1, %c0_2], %1 {strides = array<i32>} : memref<8x128xf32, #tpu.memory_space<vmem>>, vector<8x128xf32>,
    return
  }
}

</mosaic_0001>

<llo_original>
// kernel: tpu_custom_call.1
$region0: #{tpu_custom_call.1}
  #allocation0 [shape = 'u32[]', space=smem, size = 0x4, offset = 0x4, fixed_abs, tag = 'smem constant byte address 0x4 - core index']
  #allocation1 [shape = 'u32[144,128]{1,0:T(1,128)}', space=vmem, size = 0x12000, scoped, tag = 'internal scratch']
  %s0 = inlined_call_operand.hbm [shape: f32[8,128], index: 0, kind: input, shape index: {}]
  %s1 = inlined_call_operand.hbm [shape: f32[8,128], index: 1, kind: output, shape index: {}]
  %s2 = sld [smem:[#allocation0]]
  $region18: #{tpu_custom_call.1} parent=0
    _
  %s4 = ssub.s32 1, %s2
  %s5 = scalar_select 0, %s4, %s2
  $region1: #{tpu_custom_call.1} parent=0
    #allocation2 [shape = 'u8[4096]{0}', space=vmem, size = 0x1000, scoped, tag = 'input window, operand 0, single buffered']
    #allocation3 [shape = 's32[1]{0}', space=sflag, size = 0x4, scoped, tag = 'scoped memory for tpu_custom_call.1']
    #allocation4 [shape = 's32[1]{0}', space=sflag, size = 0x4, scoped, tag = 'scoped memory for tpu_custom_call.1']
    #allocation5 [shape = 'u8[4096]{0}', space=vmem, size = 0x1000, scoped, tag = 'output window, operand 0, single buffered']
    %6 = vsyncpa [#allocation3], 0
    %7 = vsyncpa [#allocation4], 0
    // Predicated region
    $region2: #{tpu_custom_call.1} parent=1 // pred_check
      _
    $region3: #{tpu_custom_call.1} parent=1 // pred_check_branch
      %9 = sbr.rel (0) target = $region5
    $region4: #{tpu_custom_call.1} parent=1 // pred_region
      %s11 = ssub.s32 128, 128
      %12 = vsyncadd [#allocation3], %s11
      %s14 = sshll.u32 [#allocation2], 4
      %s15 = int_to_ptr.vmem [resolvable:$true] %s14
      %17 = dma.hbm_to_vmem [thread:$0]  %s0, 128, %s15, [#allocation3]
    $region5: #{tpu_custom_call.1} parent=1 // pred_fallthru
      _
    // Predicated region
    $region6: #{tpu_custom_call.1} parent=1 // pred_check
      _
    $region7: #{tpu_custom_call.1} parent=1 // pred_check_branch
      %19 = sbr.rel (0) target = $region9
    $region8: #{tpu_custom_call.1} parent=1 // pred_region
      %20 = dma.done [#allocation3], 128
    $region9: #{tpu_custom_call.1} parent=1 // pred_fallthru
      _
    %v21 = vld [vmem:[#allocation2] sm:$0xff]
    %22 = vrot.lane.b32.xlu0 %v21, 1
    %v23 = vpop.permute.xlu0 %22
    %24 = vst [vmem:[#allocation5] sm:$0xff] %v23
    // Predicated region
    $region10: #{tpu_custom_call.1} parent=1 // pred_check
      _
    $region11: #{tpu_custom_call.1} parent=1 // pred_check_branch
      %26 = sbr.rel (0) target = $region13
    $region12: #{tpu_custom_call.1} parent=1 // pred_region
      %s28 = ssub.s32 128, 128
      %29 = vsyncadd [#allocation4], %s28
      %s31 = sshll.u32 [#allocation5], 4
      %s32 = int_to_ptr.vmem [resolvable:$true] %s31
      %34 = dma.vmem_to_hbm [thread:$0]  %s32, 128, %s1, [#allocation4]
    $region13: #{tpu_custom_call.1} parent=1 // pred_fallthru
      _
    // Predicated region
    $region14: #{tpu_custom_call.1} parent=1 // pred_check
      _
    $region15: #{tpu_custom_call.1} parent=1 // pred_check_branch
      %36 = sbr.rel (0) target = $region17
    $region16: #{tpu_custom_call.1} parent=1 // pred_region
      %37 = dma.done [#allocation4], 128
    $region17: #{tpu_custom_call.1} parent=1 // pred_fallthru
      _
    %38 = vsyncpa [#allocation3], 1
    %39 = vsyncpa [#allocation4], 1

</llo_original>
